<compile_context>
chip_gen: v7x
topology: tpu7x:2x2x1
jax: 0.10.0
libtpu: 0.0.40
codegen_flags: <defaults>
</compile_context>

<pallas_src>
import functools

import jax
import jax.numpy as jnp
from jax.experimental import pallas as pl
from jax.experimental.pallas import tpu as pltpu

LEAKY_SLOPE = 0.01  # torch.nn.functional.leaky_relu default negative_slope


def _leaky_relu(x):
    return jnp.where(x > 0, x, LEAKY_SLOPE * x)


def _round_up(x, m):
    return (x + m - 1) // m * m


# ----------------------------------------------------------------------------
# Kernel
# ----------------------------------------------------------------------------
def critic_kernel(state_ref, actions_ref,
                  w1_ref, b1_ref,
                  w2s_ref, w2a_ref, b2_ref,
                  w3_ref, b3_ref,
                  w4_ref, b4_ref,
                  out_ref, *, scalar_value):
    x = state_ref[...]            # (Bt, S)  bf16
    a = actions_ref[...]          # (Bt, A)  bf16

    # fc1: bf16 MXU matmul, f32 accumulate, f32 elementwise.
    h1 = jnp.dot(x, w1_ref[...], preferred_element_type=jnp.float32) + b1_ref[...]
    h1 = _leaky_relu(h1)                                   # (Bt, fc1) f32

    # fc2 on concat([h1, actions]) == h1 @ W2_state + actions @ W2_action.
    h2 = (jnp.dot(h1.astype(jnp.bfloat16), w2s_ref[...],
                  preferred_element_type=jnp.float32)
          + jnp.dot(a, w2a_ref[...], preferred_element_type=jnp.float32)
          + b2_ref[...])
    h2 = _leaky_relu(h2)                                   # (Bt, fc2) f32

    # fc3
    h3 = jnp.dot(h2.astype(jnp.bfloat16), w3_ref[...],
                 preferred_element_type=jnp.float32) + b3_ref[...]
    h3 = _leaky_relu(h3)                                   # (Bt, fc3) f32

    # fc4 (no activation)
    if scalar_value:
        # values_size == 1: VPU multiply + lane reduce; scalar bias from SMEM.
        q = jnp.sum(h3 * w4_ref[...], axis=-1, keepdims=True) + b4_ref[0, 0]
    else:
        q = jnp.dot(h3.astype(jnp.bfloat16), w4_ref[...],
                    preferred_element_type=jnp.float32) + b4_ref[...]
    out_ref[...] = q.astype(out_ref.dtype)


# ----------------------------------------------------------------------------
# Host-side wrappers
# ----------------------------------------------------------------------------
def init_params(key, state_size, action_size, values_size=1,
                fc1_units=256, fc2_units=128, fc3_units=64):
    """PyTorch-Linear-style init, stored as (in, out) f32 so kernels do x @ W."""
    def linear(key, fan_in, fan_out):
        kw, kb = jax.random.split(key)
        lim = 1.0 / jnp.sqrt(jnp.float32(fan_in))
        w = jax.random.uniform(kw, (fan_in, fan_out), jnp.float32, -lim, lim)
        b = jax.random.uniform(kb, (1, fan_out), jnp.float32, -lim, lim)
        return w, b

    k1, k2, k3, k4 = jax.random.split(key, 4)
    w1, b1 = linear(k1, state_size, fc1_units)
    w2, b2 = linear(k2, fc1_units + action_size, fc2_units)
    w3, b3 = linear(k3, fc2_units, fc3_units)
    w4, b4 = linear(k4, fc3_units, values_size)
    return (w1, b1, w2, b2, w3, b3, w4, b4)


def prepare_params(params, fc1_units=256):
    """Convert f32 (in,out) params to kernel layout: bf16 weights, split W2,
    row-layout / SMEM-scalar final layer when values_size == 1."""
    w1, b1, w2, b2, w3, b3, w4, b4 = params
    values_size = w4.shape[1]
    scalar_value = values_size == 1
    kp = {
        "w1": w1.astype(jnp.bfloat16),
        "b1": b1.astype(jnp.float32),
        "w2s": w2[:fc1_units, :].astype(jnp.bfloat16),
        "w2a": w2[fc1_units:, :].astype(jnp.bfloat16),
        "b2": b2.astype(jnp.float32),
        "w3": w3.astype(jnp.bfloat16),
        "b3": b3.astype(jnp.float32),
        "scalar_value": scalar_value,
    }
    if scalar_value:
        kp["w4"] = w4.T.astype(jnp.float32)               # (1, fc3) row, f32 (VPU path)
        kp["b4"] = b4.reshape(1, 1).astype(jnp.float32)   # SMEM scalar
    else:
        kp["w4"] = w4.astype(jnp.bfloat16)
        kp["b4"] = b4.astype(jnp.float32)
    return kp


def critic_forward(state, actions, kparams, *, block_batch=512):
    """CriticNet forward as one Pallas call, gridded over the batch."""
    B, state_size = state.shape
    action_size = actions.shape[1]
    scalar_value = kparams["scalar_value"]
    values_size = 1 if scalar_value else kparams["w4"].shape[1]

    # Batch tile: multiple of 16 (bf16 sublane packing) unless the whole
    # (8-row-rounded) batch is smaller than one tile.
    assert block_batch % 16 == 0
    b_tile = min(block_batch, _round_up(B, 8))
    b_pad = _round_up(B, b_tile)
    if b_pad != B:
        pad = b_pad - B
        state = jnp.pad(state, ((0, pad), (0, 0)))
        actions = jnp.pad(actions, ((0, pad), (0, 0)))

    # bf16 inputs: halves activation DMA bytes; matmuls accumulate in f32.
    state = state.astype(jnp.bfloat16)
    actions = actions.astype(jnp.bfloat16)

    grid = (b_pad // b_tile,)

    def resident(arr):
        # Full-array block with a constant index_map -> fetched once, stays
        # VMEM-resident across all grid steps.
        nd = arr.ndim
        return pl.BlockSpec(arr.shape, lambda i, _nd=nd: (0,) * _nd)

    in_specs = [
        pl.BlockSpec((b_tile, state_size), lambda i: (i, 0)),
        pl.BlockSpec((b_tile, action_size), lambda i: (i, 0)),
        resident(kparams["w1"]), resident(kparams["b1"]),
        resident(kparams["w2s"]), resident(kparams["w2a"]), resident(kparams["b2"]),
        resident(kparams["w3"]), resident(kparams["b3"]),
        resident(kparams["w4"]),
    ]
    if scalar_value:
        in_specs.append(
            pl.BlockSpec((1, 1), lambda i: (0, 0),
                         memory_space=pltpu.MemorySpace.SMEM))
    else:
        in_specs.append(resident(kparams["b4"]))

    out_spec = pl.BlockSpec((b_tile, values_size), lambda i: (i, 0))

    fc1 = kparams["w1"].shape[1]
    fc2 = kparams["w2s"].shape[1]
    fc3 = kparams["w3"].shape[1]
    flops = 2 * b_pad * (state_size * fc1 + (fc1 + action_size) * fc2
                         + fc2 * fc3 + fc3 * values_size)
    weight_bytes = sum(int(kparams[k].size) * kparams[k].dtype.itemsize
                       for k in ("w1", "b1", "w2s", "w2a", "b2", "w3", "b3", "w4", "b4"))
    bytes_accessed = (state.size * 2 + actions.size * 2
                      + b_pad * values_size * 4 + weight_bytes)

    kernel = functools.partial(critic_kernel, scalar_value=scalar_value)

    out = pl.pallas_call(
        kernel,
        out_shape=jax.ShapeDtypeStruct((b_pad, values_size), jnp.float32),
        grid=grid,
        in_specs=in_specs,
        out_specs=out_spec,
        compiler_params=pltpu.CompilerParams(
            dimension_semantics=("parallel",),   # megacore / 2-TC batch sharding
            vmem_limit_bytes=48 << 20,           # safe on v7x's 64 MiB VMEM
        ),
        cost_estimate=pl.CostEstimate(flops=flops, transcendentals=0,
                                      bytes_accessed=bytes_accessed),
    )(state, actions,
      kparams["w1"], kparams["b1"],
      kparams["w2s"], kparams["w2a"], kparams["b2"],
      kparams["w3"], kparams["b3"],
      kparams["w4"], kparams["b4"])

    return out[:B]


def reference_forward(state, actions, params):
    """Pure-JAX reference with the same precision policy as the kernel
    (bf16 matmul inputs, f32 accumulation, f32 elementwise)."""
    w1, b1, w2, b2, w3, b3, w4, b4 = params
    bf = lambda t: t.astype(jnp.bfloat16)
    h1 = _leaky_relu(jnp.dot(bf(state), bf(w1),
                             preferred_element_type=jnp.float32) + b1)
    h = jnp.concatenate([h1.astype(jnp.bfloat16), bf(actions)], axis=1)
    h2 = _leaky_relu(jnp.dot(h, bf(w2),
                             preferred_element_type=jnp.float32) + b2)
    h3 = _leaky_relu(jnp.dot(h2.astype(jnp.bfloat16), bf(w3),
                             preferred_element_type=jnp.float32) + b3)
    if w4.shape[1] == 1:
        return jnp.sum(h3 * w4[:, 0][None, :], axis=-1, keepdims=True) + b4
    return jnp.dot(h3.astype(jnp.bfloat16), bf(w4),
                   preferred_element_type=jnp.float32) + b4


if __name__ == "__main__":
    state_size = 32
    action_size = 8
    values_size = 1
    fc1_units, fc2_units, fc3_units = 256, 128, 64

    key = jax.random.PRNGKey(0)
    k_params, k_state, k_actions, k_state2, k_actions2 = jax.random.split(key, 5)

    params = init_params(k_params, state_size, action_size, values_size,
                         fc1_units, fc2_units, fc3_units)
    kparams = prepare_params(params, fc1_units=fc1_units)

    # Small demo batch (single grid step).
    batch = 8
    state = jax.random.normal(k_state, (batch, state_size), jnp.float32)
    actions = jax.random.normal(k_actions, (batch, action_size), jnp.float32)
    out = jax.block_until_ready(critic_forward(state, actions, kparams))
    ref = reference_forward(state, actions, params)
    assert out.shape == (batch, values_size)
    assert jnp.allclose(out, ref, atol=1e-3, rtol=1e-3), (out, ref)

    # Larger ragged batch: exercises padding, multi-step grid, resident weights.
    batch2 = 300
    state2 = jax.random.normal(k_state2, (batch2, state_size), jnp.float32)
    actions2 = jax.random.normal(k_actions2, (batch2, action_size), jnp.float32)
    out2 = jax.block_until_ready(
        critic_forward(state2, actions2, kparams, block_batch=128))
    ref2 = reference_forward(state2, actions2, params)
    assert out2.shape == (batch2, values_size)
    assert jnp.allclose(out2, ref2, atol=1e-3, rtol=1e-3)

    print("KERNEL_OK")
</pallas_src>

<mosaic_0001>
module attributes {stable_mosaic.version = 11 : i64} {
  func.func @critic_kernel(%arg0: i32, %arg1: memref<8x32xbf16, #tpu.memory_space<vmem>>, %arg2: memref<8x8xbf16, #tpu.memory_space<vmem>>, %arg3: memref<32x256xbf16, #tpu.memory_space<vmem>>, %arg4: memref<1x256xf32, #tpu.memory_space<vmem>>, %arg5: memref<256x128xbf16, #tpu.memory_space<vmem>>, %arg6: memref<8x128xbf16, #tpu.memory_space<vmem>>, %arg7: memref<1x128xf32, #tpu.memory_space<vmem>>, %arg8: memref<128x64xbf16, #tpu.memory_space<vmem>>, %arg9: memref<1x64xf32, #tpu.memory_space<vmem>>, %arg10: memref<1x64xf32, #tpu.memory_space<vmem>>, %arg11: memref<1x1xf32, #tpu.memory_space<smem>>, %arg12: memref<8x1xf32, #tpu.memory_space<vmem>>) attributes {dimension_semantics = [#tpu.dimension_semantics<parallel>], iteration_bounds = array<i64: 1>, scalar_prefetch = 0 : i64, scratch_operands = 0 : i64, tpu.core_type = #tpu.core_type<tc>, window_params = [{transform_indices = @transform_0, window_bounds = array<i64: 8, 32>}, {transform_indices = @transform_1, window_bounds = array<i64: 8, 8>}, {pipeline_mode = #tpu.pipeline_mode<synchronous>, transform_indices = @transform_2, window_bounds = array<i64: 32, 256>}, {pipeline_mode = #tpu.pipeline_mode<synchronous>, transform_indices = @transform_3, window_bounds = array<i64: 1, 256>}, {pipeline_mode = #tpu.pipeline_mode<synchronous>, transform_indices = @transform_4, window_bounds = array<i64: 256, 128>}, {pipeline_mode = #tpu.pipeline_mode<synchronous>, transform_indices = @transform_5, window_bounds = array<i64: 8, 128>}, {pipeline_mode = #tpu.pipeline_mode<synchronous>, transform_indices = @transform_6, window_bounds = array<i64: 1, 128>}, {pipeline_mode = #tpu.pipeline_mode<synchronous>, transform_indices = @transform_7, window_bounds = array<i64: 128, 64>}, {pipeline_mode = #tpu.pipeline_mode<synchronous>, transform_indices = @transform_8, window_bounds = array<i64: 1, 64>}, {pipeline_mode = #tpu.pipeline_mode<synchronous>, transform_indices = @transform_9, window_bounds = array<i64: 1, 64>}, {transform_indices = @transform_10, window_bounds = array<i64: 1, 1>}, {transform_indices = @transform_11, window_bounds = array<i64: 8, 1>}]} {
    %c0 = arith.constant 0 : index
    %c0_0 = arith.constant 0 : index
    %0 = vector.load %arg1[%c0, %c0_0] : memref<8x32xbf16, #tpu.memory_space<vmem>>, vector<8x32xbf16>
    %c0_1 = arith.constant 0 : index
    %c0_2 = arith.constant 0 : index
    %1 = vector.load %arg2[%c0_1, %c0_2] : memref<8x8xbf16, #tpu.memory_space<vmem>>, vector<8x8xbf16>
    %c0_3 = arith.constant 0 : index
    %c0_4 = arith.constant 0 : index
    %2 = vector.load %arg3[%c0_3, %c0_4] : memref<32x256xbf16, #tpu.memory_space<vmem>>, vector<32x256xbf16>
    %cst = arith.constant dense<0.000000e+00> : vector<8x256xf32>
    %3 = tpu.matmul %0, %2, %cst {dimension_numbers = #tpu.dot_dimension_numbers<[1], [0], [0], [1], [0, 0, 1, 1], [], []>} : vector<8x32xbf16>, vector<32x256xbf16>, vector<8x256xf32> -> vector<8x256xf32>
    %c0_5 = arith.constant 0 : index
    %c0_6 = arith.constant 0 : index
    %4 = vector.load %arg4[%c0_5, %c0_6] : memref<1x256xf32, #tpu.memory_space<vmem>>, vector<1x256xf32>
    %5 = vector.broadcast %4 : vector<1x256xf32> to vector<8x256xf32>
    %6 = arith.addf %3, %5 : vector<8x256xf32>
    %cst_7 = arith.constant 0.000000e+00 : f32
    %7 = vector.broadcast %cst_7 : f32 to vector<8x256xf32>
    %8 = arith.cmpf ogt, %6, %7 : vector<8x256xf32>
    %cst_8 = arith.constant 0.00999999977 : f32
    %9 = vector.broadcast %cst_8 : f32 to vector<8x256xf32>
    %10 = arith.mulf %9, %6 : vector<8x256xf32>
    %11 = arith.select %8, %6, %10 : vector<8x256xi1>, vector<8x256xf32>
    %12 = arith.truncf %11 : vector<8x256xf32> to vector<8x256xbf16>
    %c0_9 = arith.constant 0 : index
    %c0_10 = arith.constant 0 : index
    %13 = vector.load %arg5[%c0_9, %c0_10] : memref<256x128xbf16, #tpu.memory_space<vmem>>, vector<256x128xbf16>
    %cst_11 = arith.constant dense<0.000000e+00> : vector<8x128xf32>
    %14 = tpu.matmul %12, %13, %cst_11 {dimension_numbers = #tpu.dot_dimension_numbers<[1], [0], [0], [1], [0, 0, 1, 1], [], []>} : vector<8x256xbf16>, vector<256x128xbf16>, vector<8x128xf32> -> vector<8x128xf32>
    %c0_12 = arith.constant 0 : index
    %c0_13 = arith.constant 0 : index
    %15 = vector.load %arg6[%c0_12, %c0_13] : memref<8x128xbf16, #tpu.memory_space<vmem>>, vector<8x128xbf16>
    %cst_14 = arith.constant dense<0.000000e+00> : vector<8x128xf32>
    %16 = tpu.matmul %1, %15, %cst_14 {dimension_numbers = #tpu.dot_dimension_numbers<[1], [0], [0], [1], [0, 0, 1, 1], [], []>} : vector<8x8xbf16>, vector<8x128xbf16>, vector<8x128xf32> -> vector<8x128xf32>
    %17 = arith.addf %14, %16 : vector<8x128xf32>
    %c0_15 = arith.constant 0 : index
    %c0_16 = arith.constant 0 : index
    %18 = vector.load %arg7[%c0_15, %c0_16] : memref<1x128xf32, #tpu.memory_space<vmem>>, vector<1x128xf32>
    %19 = vector.broadcast %18 : vector<1x128xf32> to vector<8x128xf32>
    %20 = arith.addf %17, %19 : vector<8x128xf32>
    %cst_17 = arith.constant 0.000000e+00 : f32
    %21 = vector.broadcast %cst_17 : f32 to vector<8x128xf32>
    %22 = arith.cmpf ogt, %20, %21 : vector<8x128xf32>
    %cst_18 = arith.constant 0.00999999977 : f32
    %23 = vector.broadcast %cst_18 : f32 to vector<8x128xf32>
    %24 = arith.mulf %23, %20 : vector<8x128xf32>
    %25 = arith.select %22, %20, %24 : vector<8x128xi1>, vector<8x128xf32>
    %26 = arith.truncf %25 : vector<8x128xf32> to vector<8x128xbf16>
    %c0_19 = arith.constant 0 : index
    %c0_20 = arith.constant 0 : index
    %27 = vector.load %arg8[%c0_19, %c0_20] : memref<128x64xbf16, #tpu.memory_space<vmem>>, vector<128x64xbf16>
    %cst_21 = arith.constant dense<0.000000e+00> : vector<8x64xf32>
    %28 = tpu.matmul %26, %27, %cst_21 {dimension_numbers = #tpu.dot_dimension_numbers<[1], [0], [0], [1], [0, 0, 1, 1], [], []>} : vector<8x128xbf16>, vector<128x64xbf16>, vector<8x64xf32> -> vector<8x64xf32>
    %c0_22 = arith.constant 0 : index
    %c0_23 = arith.constant 0 : index
    %29 = vector.load %arg9[%c0_22, %c0_23] : memref<1x64xf32, #tpu.memory_space<vmem>>, vector<1x64xf32>
    %30 = vector.broadcast %29 : vector<1x64xf32> to vector<8x64xf32>
    %31 = arith.addf %28, %30 : vector<8x64xf32>
    %cst_24 = arith.constant 0.000000e+00 : f32
    %32 = vector.broadcast %cst_24 : f32 to vector<8x64xf32>
    %33 = arith.cmpf ogt, %31, %32 : vector<8x64xf32>
    %cst_25 = arith.constant 0.00999999977 : f32
    %34 = vector.broadcast %cst_25 : f32 to vector<8x64xf32>
    %35 = arith.mulf %34, %31 : vector<8x64xf32>
    %36 = arith.select %33, %31, %35 : vector<8x64xi1>, vector<8x64xf32>
    %c0_26 = arith.constant 0 : index
    %c0_27 = arith.constant 0 : index
    %37 = vector.load %arg10[%c0_26, %c0_27] : memref<1x64xf32, #tpu.memory_space<vmem>>, vector<1x64xf32>
    %38 = vector.broadcast %37 : vector<1x64xf32> to vector<8x64xf32>
    %39 = arith.mulf %36, %38 : vector<8x64xf32>
    %cst_28 = arith.constant dense<0.000000e+00> : vector<8xf32>
    %40 = vector.multi_reduction <add>, %39, %cst_28 [1] : vector<8x64xf32> to vector<8xf32>
    %41 = vector.shape_cast %40 : vector<8xf32> to vector<8x1xf32>
    %c0_29 = arith.constant 0 : index
    %c0_30 = arith.constant 0 : index
    %42 = memref.load %arg11[%c0_29, %c0_30] : memref<1x1xf32, #tpu.memory_space<smem>>
    %43 = vector.broadcast %42 : f32 to vector<8x1xf32>
    %44 = arith.addf %41, %43 : vector<8x1xf32>
    %c0_31 = arith.constant 0 : index
    %c0_32 = arith.constant 0 : index
    %45 = vector.load %arg12[%c0_31, %c0_32] : memref<8x1xf32, #tpu.memory_space<vmem>>, vector<8x1xf32>
    tpu.vector_store %arg12[%c0_31, %c0_32], %44 {strides = array<i32>} : memref<8x1xf32, #tpu.memory_space<vmem>>, vector<8x1xf32>,
    return
  }
  func.func @transform_0(%arg0: i32) -> (i32, i32) {
    %c0_i32 = arith.constant 0 : i32
    %c0_i32_0 = arith.constant 0 : i32
    return %arg0, %c0_i32 : i32, i32
  }
  func.func @transform_1(%arg0: i32) -> (i32, i32) {
    %c0_i32 = arith.constant 0 : i32
    %c0_i32_0 = arith.constant 0 : i32
    return %arg0, %c0_i32 : i32, i32
  }
  func.func @transform_2(%arg0: i32) -> (i32, i32) {
    %c0_i32 = arith.constant 0 : i32
    %c0_i32_0 = arith.constant 0 : i32
    %c0_i32_1 = arith.constant 0 : i32
    return %c0_i32, %c0_i32_0 : i32, i32
  }
  func.func @transform_3(%arg0: i32) -> (i32, i32) {
    %c0_i32 = arith.constant 0 : i32
    %c0_i32_0 = arith.constant 0 : i32
    %c0_i32_1 = arith.constant 0 : i32
    return %c0_i32, %c0_i32_0 : i32, i32
  }
  func.func @transform_4(%arg0: i32) -> (i32, i32) {
    %c0_i32 = arith.constant 0 : i32
    %c0_i32_0 = arith.constant 0 : i32
    %c0_i32_1 = arith.constant 0 : i32
    return %c0_i32, %c0_i32_0 : i32, i32
  }
  func.func @transform_5(%arg0: i32) -> (i32, i32) {
    %c0_i32 = arith.constant 0 : i32
    %c0_i32_0 = arith.constant 0 : i32
    %c0_i32_1 = arith.constant 0 : i32
    return %c0_i32, %c0_i32_0 : i32, i32
  }
  func.func @transform_6(%arg0: i32) -> (i32, i32) {
    %c0_i32 = arith.constant 0 : i32
    %c0_i32_0 = arith.constant 0 : i32
    %c0_i32_1 = arith.constant 0 : i32
    return %c0_i32, %c0_i32_0 : i32, i32
  }
  func.func @transform_7(%arg0: i32) -> (i32, i32) {
    %c0_i32 = arith.constant 0 : i32
    %c0_i32_0 = arith.constant 0 : i32
    %c0_i32_1 = arith.constant 0 : i32
    return %c0_i32, %c0_i32_0 : i32, i32
  }
  func.func @transform_8(%arg0: i32) -> (i32, i32) {
    %c0_i32 = arith.constant 0 : i32
    %c0_i32_0 = arith.constant 0 : i32
    %c0_i32_1 = arith.constant 0 : i32
    return %c0_i32, %c0_i32_0 : i32, i32
  }
  func.func @transform_9(%arg0: i32) -> (i32, i32) {
    %c0_i32 = arith.constant 0 : i32
    %c0_i32_0 = arith.constant 0 : i32
    %c0_i32_1 = arith.constant 0 : i32
    return %c0_i32, %c0_i32_0 : i32, i32
  }
  func.func @transform_10(%arg0: i32) -> (i32, i32) {
    %c0_i32 = arith.constant 0 : i32
    %c0_i32_0 = arith.constant 0 : i32
    %c0_i32_1 = arith.constant 0 : i32
    return %c0_i32, %c0_i32_0 : i32, i32
  }
  func.func @transform_11(%arg0: i32) -> (i32, i32) {
    %c0_i32 = arith.constant 0 : i32
    %c0_i32_0 = arith.constant 0 : i32
    return %arg0, %c0_i32 : i32, i32
  }
}

</mosaic_0001>

<llo_original>
// kernel: tpu_custom_call.1
$region0: #{tpu_custom_call.1}
  #allocation0 [shape = 'u32[]', space=smem, size = 0x4, offset = 0x4, fixed_abs, tag = 'smem constant byte address 0x4 - core index']
  #allocation1 [shape = 'u32[144,128]{1,0:T(1,128)}', space=vmem, size = 0x12000, scoped, tag = 'internal scratch']
  #allocation2 [shape = 'f32[1,1]{1,0:T(1,128)S(6)}', space=smem, size = 0x200, scoped, tag = 'scoped memory for tpu_custom_call.1']
  %s0 = inlined_call_operand.vmem [shape: bf16[8,32], index: 0, kind: input, shape index: {}]
  %s1 = inlined_call_operand.vmem [shape: bf16[8,8], index: 1, kind: input, shape index: {}]
  %s2 = inlined_call_operand.vmem [shape: bf16[32,256], index: 2, kind: input, shape index: {}]
  %s3 = inlined_call_operand.vmem [shape: f32[1,256], index: 3, kind: input, shape index: {}]
  %s4 = inlined_call_operand.hbm [shape: bf16[256,128], index: 4, kind: input, shape index: {}]
  %s5 = inlined_call_operand.vmem [shape: bf16[8,128], index: 5, kind: input, shape index: {}]
  %s6 = inlined_call_operand.vmem [shape: f32[1,128], index: 6, kind: input, shape index: {}]
  %s7 = inlined_call_operand.vmem [shape: bf16[128,64], index: 7, kind: input, shape index: {}]
  %s8 = inlined_call_operand.vmem [shape: f32[1,64], index: 8, kind: input, shape index: {}]
  %s9 = inlined_call_operand.vmem [shape: f32[1,64], index: 9, kind: input, shape index: {}]
  %s10 = inlined_call_operand.<no memory space> [shape: f32[1,1], index: 10, kind: input, shape index: {}]
  %s11 = inlined_call_operand.vmem [shape: f32[8,1], index: 11, kind: output, shape index: {}]
  %s12 = sld [smem:[#allocation0]]
  $region58: #{tpu_custom_call.1} parent=0
    _
  %s14 = ssub.s32 1, %s12
  %s15 = scalar_select 0, %s14, %s12
  %16 = sst [smem:[#allocation2]] %s10
  $region1: #{tpu_custom_call.1} parent=0
    #allocation3 [shape = 'u8[65536]{0}', space=vmem, size = 0x10000, scoped, tag = 'input window, operand 4, single buffered']
    #allocation4 [shape = 's32[1]{0}', space=sflag, size = 0x4, scoped, tag = 'scoped memory for tpu_custom_call.1']
    %17 = vsyncpa [#allocation4], 0
    // Predicated region
    $region2: #{tpu_custom_call.1} parent=1 // pred_check
      _
    $region3: #{tpu_custom_call.1} parent=1 // pred_check_branch
      %19 = sbr.rel (0) target = $region5
    $region4: #{tpu_custom_call.1} parent=1 // pred_region
      _
    $region5: #{tpu_custom_call.1} parent=1 // pred_fallthru
      _
    // Predicated region
    $region6: #{tpu_custom_call.1} parent=1 // pred_check
      _
    $region7: #{tpu_custom_call.1} parent=1 // pred_check_branch
      %21 = sbr.rel (0) target = $region9
    $region8: #{tpu_custom_call.1} parent=1 // pred_region
      _
    $region9: #{tpu_custom_call.1} parent=1 // pred_fallthru
      _
    // Predicated region
    $region10: #{tpu_custom_call.1} parent=1 // pred_check
      _
    $region11: #{tpu_custom_call.1} parent=1 // pred_check_branch
      %23 = sbr.rel (0) target = $region13
    $region12: #{tpu_custom_call.1} parent=1 // pred_region
      _
    $region13: #{tpu_custom_call.1} parent=1 // pred_fallthru
      _
    // Predicated region
    $region14: #{tpu_custom_call.1} parent=1 // pred_check
      _
    $region15: #{tpu_custom_call.1} parent=1 // pred_check_branch
      %25 = sbr.rel (0) target = $region17
    $region16: #{tpu_custom_call.1} parent=1 // pred_region
      _
    $region17: #{tpu_custom_call.1} parent=1 // pred_fallthru
      _
    // Predicated region
    $region18: #{tpu_custom_call.1} parent=1 // pred_check
      _
    $region19: #{tpu_custom_call.1} parent=1 // pred_check_branch
      %27 = sbr.rel (0) target = $region21
    $region20: #{tpu_custom_call.1} parent=1 // pred_region
      %s29 = ssub.s32 2048, 2048
      %30 = vsyncadd [#allocation4], %s29
      %s31 = sshll.u32 [#allocation3], 4
      %s32 = int_to_ptr.vmem [resolvable:$true] %s31
      %37 = dma.hbm_to_vmem [thread:$0]  %s4, 2048, %s32, [#allocation4], 64, 64, 4
    $region21: #{tpu_custom_call.1} parent=1 // pred_fallthru
      _
    // Predicated region
    $region22: #{tpu_custom_call.1} parent=1 // pred_check
      _
    $region23: #{tpu_custom_call.1} parent=1 // pred_check_branch
      %39 = sbr.rel (0) target = $region25
    $region24: #{tpu_custom_call.1} parent=1 // pred_region
      _
    $region25: #{tpu_custom_call.1} parent=1 // pred_fallthru
      _
    // Predicated region
    $region26: #{tpu_custom_call.1} parent=1 // pred_check
      _
    $region27: #{tpu_custom_call.1} parent=1 // pred_check_branch
      %41 = sbr.rel (0) target = $region29
    $region28: #{tpu_custom_call.1} parent=1 // pred_region
      _
    $region29: #{tpu_custom_call.1} parent=1 // pred_fallthru
      _
    // Predicated region
    $region30: #{tpu_custom_call.1} parent=1 // pred_check
      _
    $region31: #{tpu_custom_call.1} parent=1 // pred_check_branch
      %43 = sbr.rel (0) target = $region33
    $region32: #{tpu_custom_call.1} parent=1 // pred_region
      _
    $region33: #{tpu_custom_call.1} parent=1 // pred_fallthru
      _
    // Predicated region
    $region34: #{tpu_custom_call.1} parent=1 // pred_check
      _
    $region35: #{tpu_custom_call.1} parent=1 // pred_check_branch
      %45 = sbr.rel (0) target = $region37
    $region36: #{tpu_custom_call.1} parent=1 // pred_region
      _
    $region37: #{tpu_custom_call.1} parent=1 // pred_fallthru
      _
    // Predicated region
    $region38: #{tpu_custom_call.1} parent=1 // pred_check
      _
    $region39: #{tpu_custom_call.1} parent=1 // pred_check_branch
      %47 = sbr.rel (0) target = $region41
    $region40: #{tpu_custom_call.1} parent=1 // pred_region
      _
    $region41: #{tpu_custom_call.1} parent=1 // pred_fallthru
      _
    // Predicated region
    $region42: #{tpu_custom_call.1} parent=1 // pred_check
      _
    $region43: #{tpu_custom_call.1} parent=1 // pred_check_branch
      %49 = sbr.rel (0) target = $region45
    $region44: #{tpu_custom_call.1} parent=1 // pred_region
      _
    $region45: #{tpu_custom_call.1} parent=1 // pred_fallthru
      _
    // Predicated region
    $region46: #{tpu_custom_call.1} parent=1 // pred_check
      _
    $region47: #{tpu_custom_call.1} parent=1 // pred_check_branch
      %51 = sbr.rel (0) target = $region49
    $region48: #{tpu_custom_call.1} parent=1 // pred_region
      %52 = dma.done [#allocation4], 2048
    $region49: #{tpu_custom_call.1} parent=1 // pred_fallthru
      _
    %v54 = vld [vmem:[%s0] sm:$0xf]
    %v55 = vld [vmem:[%s1] sm:$0xf]
    %v56 = vld [vmem:[%s2] sm:$0xff]
    %v57 = vld [vmem:[%s2 + $0x8] sm:$0xff]
    %v58 = vld [vmem:[%s2 + $0x10] sm:$0xff]
    %v59 = vld [vmem:[%s2 + $0x18] sm:$0xff]
    %v60 = vld [vmem:[%s3] sm:$0x3]
    %v62 = vlaneseq
    %v63 = vshrl.u32 %v62, 7
    %v64 = vsub.s32 0, %v63
    %v65 = vrot.slane %v60, %v64
    %v66 = vlaneseq
    %v67 = vshrl.u32 %v66, 7
    %v68 = vsub.s32 1, %v67
    %v69 = vrot.slane %v60, %v68
    %v76 = vunpack.c.l.b16 %v56
    %v77 = vunpack.c.h.b16 %v56
    %v78 = vunpack.c.l.b16 %v57
    %v79 = vunpack.c.h.b16 %v57
    %v80 = vunpack.c.l.b16 %v58
    %v81 = vunpack.c.h.b16 %v58
    %v82 = vunpack.c.l.b16 %v59
    %v83 = vunpack.c.h.b16 %v59
    %v84 = vpack.c.b16 %v78, %v76
    %v85 = vpack.c.b16 %v79, %v77
    %v86 = vpack.c.b16 %v82, %v80
    %v87 = vpack.c.b16 %v83, %v81
    %vm92 = vcmask 261120
    %v94 = vsel %vm92, %v54, 0
    %96 = vmatprep.subr.bf16.mxu0 %v85
    %97 = vmatpush1.bf16.msra.mxu0 %v84
    %98 = vmatprep.subr.bf16.mxu0 %v87
    %99 = vmatpush1.bf16.msra.mxu0 %v86
    %100 = vmatprep.subr.bf16.mxu0 0
    %101 = vmatpush1.bf16.msra.mxu0 0
    %102 = vmatprep.subr.bf16.mxu0 0
    %103 = vmatpush1.bf16.msra.mxu0 0
    %104 = vmatprep.subr.bf16.mxu0 0
    %105 = vmatpush1.bf16.msra.mxu0 0
    %106 = vmatprep.subr.bf16.mxu0 0
    %107 = vmatpush1.bf16.msra.mxu0 0
    %108 = vmatprep.subr.bf16.mxu0 0
    %109 = vmatpush1.bf16.msra.mxu0 0
    %110 = vmatprep.subr.bf16.mxu0 0
    %111 = vmatpush1.bf16.msra.mxu0 0
    %112 = vmatprep.subr.bf16.mxu0 0
    %113 = vmatpush1.bf16.msra.mxu0 0
    %114 = vmatprep.subr.bf16.mxu0 0
    %115 = vmatpush1.bf16.msra.mxu0 0
    %116 = vmatprep.subr.bf16.mxu0 0
    %117 = vmatpush1.bf16.msra.mxu0 0
    %118 = vmatprep.subr.bf16.mxu0 0
    %119 = vmatpush1.bf16.msra.mxu0 0
    %120 = vmatprep.subr.bf16.mxu0 0
    %121 = vmatpush1.bf16.msra.mxu0 0
    %122 = vmatprep.subr.bf16.mxu0 0
    %123 = vmatpush1.bf16.msra.mxu0 0
    %124 = vmatprep.subr.bf16.mxu0 0
    %125 = vmatpush1.bf16.msra.mxu0 0
    %126 = vmatprep.subr.bf16.mxu0 0
    %127 = vmatpush1.bf16.msra.mxu0 0
    %128 = vmatprep.mubr.bf16.mxu0 0
    %129 = vmatmul.mubr.bf16.gmra.mrb[0].mxu0 %v94
    %v130 = vpop.f32.mrb[0].mxu0
    %v131 = vadd.f32 %v65, %v130
    %v132 = vpop.f32.mrb[0].mxu0
    %v133 = vadd.f32 %v69, %v132
    %v134 = vpop.f32.mrb[0].mxu0
    %v135 = vpop.f32.mrb[0].mxu0
    %136 = vdwg.mxu0
    %vm137 = vcmp.gt.f32.partialorder %v131, 0.0
    %vm138 = vcmp.gt.f32.partialorder %v133, 0.0
    %v139 = vmul.f32 %v131, 0.01
    %v140 = vmul.f32 %v133, 0.01
    %v141 = vsel %vm137, %v131, %v139
    %v142 = vsel %vm138, %v133, %v140
    %v143 = vpack.c.bf16 %v141, %v141
    %v144 = vpack.c.bf16 %v142, %v142
    %v145 = vld [vmem:[#allocation3] sm:$0xf]
    %v146 = vld [vmem:[#allocation3 + $0x4] sm:$0xf]
    %v147 = vld [vmem:[#allocation3 + $0x8] sm:$0xf]
    %v148 = vld [vmem:[#allocation3 + $0xc] sm:$0xf]
    %v149 = vld [vmem:[#allocation3 + $0x10] sm:$0xf]
    %v150 = vld [vmem:[#allocation3 + $0x14] sm:$0xf]
    %v151 = vld [vmem:[#allocation3 + $0x18] sm:$0xf]
    %v152 = vld [vmem:[#allocation3 + $0x1c] sm:$0xf]
    %v153 = vld [vmem:[#allocation3 + $0x20] sm:$0xf]
    %v154 = vld [vmem:[#allocation3 + $0x24] sm:$0xf]
    %v155 = vld [vmem:[#allocation3 + $0x28] sm:$0xf]
    %v156 = vld [vmem:[#allocation3 + $0x2c] sm:$0xf]
    %v157 = vld [vmem:[#allocation3 + $0x30] sm:$0xf]
    %v158 = vld [vmem:[#allocation3 + $0x34] sm:$0xf]
    %v159 = vld [vmem:[#allocation3 + $0x38] sm:$0xf]
    %v160 = vld [vmem:[#allocation3 + $0x3c] sm:$0xf]
    %v161 = vld [vmem:[#allocation3 + $0x40] sm:$0xf]
    %v162 = vld [vmem:[#allocation3 + $0x44] sm:$0xf]
    %v163 = vld [vmem:[#allocation3 + $0x48] sm:$0xf]
    %v164 = vld [vmem:[#allocation3 + $0x4c] sm:$0xf]
    %v165 = vld [vmem:[#allocation3 + $0x50] sm:$0xf]
    %v166 = vld [vmem:[#allocation3 + $0x54] sm:$0xf]
    %v167 = vld [vmem:[#allocation3 + $0x58] sm:$0xf]
    %v168 = vld [vmem:[#allocation3 + $0x5c] sm:$0xf]
    %v169 = vld [vmem:[#allocation3 + $0x60] sm:$0xf]
    %v170 = vld [vmem:[#allocation3 + $0x64] sm:$0xf]
    %v171 = vld [vmem:[#allocation3 + $0x68] sm:$0xf]
    %v172 = vld [vmem:[#allocation3 + $0x6c] sm:$0xf]
    %v173 = vld [vmem:[#allocation3 + $0x70] sm:$0xf]
    %v174 = vld [vmem:[#allocation3 + $0x74] sm:$0xf]
    %v175 = vld [vmem:[#allocation3 + $0x78] sm:$0xf]
    %v176 = vld [vmem:[#allocation3 + $0x7c] sm:$0xf]
    %v177 = vld [vmem:[%s5] sm:$0xf]
    %vm178 = vcmask 64512
    %v180 = vsel %vm178, %v55, 0
    %vm182 = vcmask 1043456
    %v184 = vsel %vm182, %v177, 0
    %186 = vmatprep.subr.bf16.mxu0 0
    %187 = vmatpush1.bf16.msra.mxu0 %v184
    %188 = vmatprep.subr.bf16.mxu0 0
    %189 = vmatpush1.bf16.msra.mxu0 0
    %190 = vmatprep.subr.bf16.mxu0 0
    %191 = vmatpush1.bf16.msra.mxu0 0
    %192 = vmatprep.subr.bf16.mxu0 0
    %193 = vmatpush1.bf16.msra.mxu0 0
    %194 = vmatprep.subr.bf16.mxu0 0
    %195 = vmatpush1.bf16.msra.mxu0 0
    %196 = vmatprep.subr.bf16.mxu0 0
    %197 = vmatpush1.bf16.msra.mxu0 0
    %198 = vmatprep.subr.bf16.mxu0 0
    %199 = vmatpush1.bf16.msra.mxu0 0
    %200 = vmatprep.subr.bf16.mxu0 0
    %201 = vmatpush1.bf16.msra.mxu0 0
    %202 = vmatprep.subr.bf16.mxu0 0
    %203 = vmatpush1.bf16.msra.mxu0 0
    %204 = vmatprep.subr.bf16.mxu0 0
    %205 = vmatpush1.bf16.msra.mxu0 0
    %206 = vmatprep.subr.bf16.mxu0 0
    %207 = vmatpush1.bf16.msra.mxu0 0
    %208 = vmatprep.subr.bf16.mxu0 0
    %209 = vmatpush1.bf16.msra.mxu0 0
    %210 = vmatprep.subr.bf16.mxu0 0
    %211 = vmatpush1.bf16.msra.mxu0 0
    %212 = vmatprep.subr.bf16.mxu0 0
    %213 = vmatpush1.bf16.msra.mxu0 0
    %214 = vmatprep.subr.bf16.mxu0 0
    %215 = vmatpush1.bf16.msra.mxu0 0
    %216 = vmatprep.subr.bf16.mxu0 0
    %217 = vmatpush1.bf16.msra.mxu0 0
    %218 = vmatprep.mubr.bf16.mxu0 0
    %219 = vmatmul.mubr.bf16.gmra.mrb[0].mxu0 %v180
    %v220 = vpop.f32.mrb[0].mxu0
    %v221 = vadd.f32 0.0, %v220
    %v222 = vpop.f32.mrb[0].mxu0
    %v223 = vpop.f32.mrb[0].mxu0
    %v224 = vpop.f32.mrb[0].mxu0
    %225 = vdwg.mxu0
    %v258 = vunpack.c.l.b16 %v145
    %v259 = vunpack.c.l.b16 %v146
    %v260 = vunpack.c.l.b16 %v147
    %v261 = vunpack.c.l.b16 %v148
    %v262 = vunpack.c.l.b16 %v149
    %v263 = vunpack.c.l.b16 %v150
    %v264 = vunpack.c.l.b16 %v151
    %v265 = vunpack.c.l.b16 %v152
    %v266 = vunpack.c.l.b16 %v153
    %v267 = vunpack.c.l.b16 %v154
    %v268 = vunpack.c.l.b16 %v155
    %v269 = vunpack.c.l.b16 %v156
    %v270 = vunpack.c.l.b16 %v157
    %v271 = vunpack.c.l.b16 %v158
    %v272 = vunpack.c.l.b16 %v159
    %v273 = vunpack.c.l.b16 %v160
    %v274 = vunpack.c.l.b16 %v161
    %v275 = vunpack.c.l.b16 %v162
    %v276 = vunpack.c.l.b16 %v163
    %v277 = vunpack.c.l.b16 %v164
    %v278 = vunpack.c.l.b16 %v165
    %v279 = vunpack.c.l.b16 %v166
    %v280 = vunpack.c.l.b16 %v167
    %v281 = vunpack.c.l.b16 %v168
    %v282 = vunpack.c.l.b16 %v169
    %v283 = vunpack.c.l.b16 %v170
    %v284 = vunpack.c.l.b16 %v171
    %v285 = vunpack.c.l.b16 %v172
    %v286 = vunpack.c.l.b16 %v173
    %v287 = vunpack.c.l.b16 %v174
    %v288 = vunpack.c.l.b16 %v175
    %v289 = vunpack.c.l.b16 %v176
    %v290 = vpack.c.b16 %v259, %v258
    %v291 = vpack.c.b16 %v261, %v260
    %v292 = vpack.c.b16 %v263, %v262
    %v293 = vpack.c.b16 %v265, %v264
    %v294 = vpack.c.b16 %v267, %v266
    %v295 = vpack.c.b16 %v269, %v268
    %v296 = vpack.c.b16 %v271, %v270
    %v297 = vpack.c.b16 %v273, %v272
    %v298 = vpack.c.b16 %v275, %v274
    %v299 = vpack.c.b16 %v277, %v276
    %v300 = vpack.c.b16 %v279, %v278
    %v301 = vpack.c.b16 %v281, %v280
    %v302 = vpack.c.b16 %v283, %v282
    %v303 = vpack.c.b16 %v285, %v284
    %v304 = vpack.c.b16 %v287, %v286
    %v305 = vpack.c.b16 %v289, %v288
    %322 = vmatprep.subr.bf16.mxu0 0
    %323 = vmatpush1.bf16.msra.mxu0 %v290
    %324 = vmatprep.subr.bf16.mxu0 0
    %325 = vmatpush1.bf16.msra.mxu0 %v291
    %326 = vmatprep.subr.bf16.mxu0 0
    %327 = vmatpush1.bf16.msra.mxu0 %v292
    %328 = vmatprep.subr.bf16.mxu0 0
    %329 = vmatpush1.bf16.msra.mxu0 %v293
    %330 = vmatprep.subr.bf16.mxu0 0
    %331 = vmatpush1.bf16.msra.mxu0 %v294
    %332 = vmatprep.subr.bf16.mxu0 0
    %333 = vmatpush1.bf16.msra.mxu0 %v295
    %334 = vmatprep.subr.bf16.mxu0 0
    %335 = vmatpush1.bf16.msra.mxu0 %v296
    %336 = vmatprep.subr.bf16.mxu0 0
    %337 = vmatpush1.bf16.msra.mxu0 %v297
    %338 = vmatprep.subr.bf16.mxu0 0
    %339 = vmatpush1.bf16.msra.mxu0 %v298
    %340 = vmatprep.subr.bf16.mxu0 0
    %341 = vmatpush1.bf16.msra.mxu0 %v299
    %342 = vmatprep.subr.bf16.mxu0 0
    %343 = vmatpush1.bf16.msra.mxu0 %v300
    %344 = vmatprep.subr.bf16.mxu0 0
    %345 = vmatpush1.bf16.msra.mxu0 %v301
    %346 = vmatprep.subr.bf16.mxu0 0
    %347 = vmatpush1.bf16.msra.mxu0 %v302
    %348 = vmatprep.subr.bf16.mxu0 0
    %349 = vmatpush1.bf16.msra.mxu0 %v303
    %350 = vmatprep.subr.bf16.mxu0 0
    %351 = vmatpush1.bf16.msra.mxu0 %v304
    %352 = vmatprep.subr.bf16.mxu0 0
    %353 = vmatpush1.bf16.msra.mxu0 %v305
    %354 = vmatprep.mubr.bf16.mxu0 %v144
    %355 = vmatmul.mubr.bf16.gmra.mrb[0].mxu0 %v143
    %v356 = vpop.f32.mrb[0].mxu0
    %v357 = vadd.f32 %v221, %v356
    %v358 = vpop.f32.mrb[0].mxu0
    %v359 = vpop.f32.mrb[0].mxu0
    %v360 = vpop.f32.mrb[0].mxu0
    %361 = vdwg.mxu0
    %v362 = vld [vmem:[%s6] sm:$0x1]
    %v364 = vlaneseq
    %v365 = vshrl.u32 %v364, 7
    %v366 = vsub.s32 0, %v365
    %v367 = vrot.slane %v362, %v366
    %v369 = vadd.f32 %v357, %v367
    %vm370 = vcmp.gt.f32.partialorder %v369, 0.0
    %v371 = vmul.f32 %v369, 0.01
    %v372 = vsel %vm370, %v369, %v371
    %v373 = vpack.c.bf16 %v372, %v372
    %v374 = vld [vmem:[%s7] sm:$0xf]
    %v375 = vld [vmem:[%s7 + $0x4] sm:$0xf]
    %v376 = vld [vmem:[%s7 + $0x8] sm:$0xf]
    %v377 = vld [vmem:[%s7 + $0xc] sm:$0xf]
    %v378 = vld [vmem:[%s7 + $0x10] sm:$0xf]
    %v379 = vld [vmem:[%s7 + $0x14] sm:$0xf]
    %v380 = vld [vmem:[%s7 + $0x18] sm:$0xf]
    %v381 = vld [vmem:[%s7 + $0x1c] sm:$0xf]
    %v382 = vld [vmem:[%s7 + $0x20] sm:$0xf]
    %v383 = vld [vmem:[%s7 + $0x24] sm:$0xf]
    %v384 = vld [vmem:[%s7 + $0x28] sm:$0xf]
    %v385 = vld [vmem:[%s7 + $0x2c] sm:$0xf]
    %v386 = vld [vmem:[%s7 + $0x30] sm:$0xf]
    %v387 = vld [vmem:[%s7 + $0x34] sm:$0xf]
    %v388 = vld [vmem:[%s7 + $0x38] sm:$0xf]
    %v389 = vld [vmem:[%s7 + $0x3c] sm:$0xf]
    %v390 = vld [vmem:[%s8] sm:$0x1]
    %v392 = vlaneseq
    %v393 = vshrl.u32 %v392, 7
    %v394 = vsub.s32 0, %v393
    %v395 = vrot.slane %v390, %v394
    %v413 = vunpack.c.l.b16 %v374
    %v414 = vunpack.c.l.b16 %v375
    %v415 = vunpack.c.l.b16 %v376
    %v416 = vunpack.c.l.b16 %v377
    %v417 = vunpack.c.l.b16 %v378
    %v418 = vunpack.c.l.b16 %v379
    %v419 = vunpack.c.l.b16 %v380
    %v420 = vunpack.c.l.b16 %v381
    %v421 = vunpack.c.l.b16 %v382
    %v422 = vunpack.c.l.b16 %v383
    %v423 = vunpack.c.l.b16 %v384
    %v424 = vunpack.c.l.b16 %v385
    %v425 = vunpack.c.l.b16 %v386
    %v426 = vunpack.c.l.b16 %v387
    %v427 = vunpack.c.l.b16 %v388
    %v428 = vunpack.c.l.b16 %v389
    %v429 = vpack.c.b16 %v414, %v413
    %v430 = vpack.c.b16 %v416, %v415
    %v431 = vpack.c.b16 %v418, %v417
    %v432 = vpack.c.b16 %v420, %v419
    %v433 = vpack.c.b16 %v422, %v421
    %v434 = vpack.c.b16 %v424, %v423
    %v435 = vpack.c.b16 %v426, %v425
    %v436 = vpack.c.b16 %v428, %v427
    %445 = vmatprep.subr.bf16.mxu0 0
    %446 = vmatpush1.bf16.msra.mxu0 %v429
    %447 = vmatprep.subr.bf16.mxu0 0
    %448 = vmatpush1.bf16.msra.mxu0 %v430
    %449 = vmatprep.subr.bf16.mxu0 0
    %450 = vmatpush1.bf16.msra.mxu0 %v431
    %451 = vmatprep.subr.bf16.mxu0 0
    %452 = vmatpush1.bf16.msra.mxu0 %v432
    %453 = vmatprep.subr.bf16.mxu0 0
    %454 = vmatpush1.bf16.msra.mxu0 %v433
    %455 = vmatprep.subr.bf16.mxu0 0
    %456 = vmatpush1.bf16.msra.mxu0 %v434
    %457 = vmatprep.subr.bf16.mxu0 0
    %458 = vmatpush1.bf16.msra.mxu0 %v435
    %459 = vmatprep.subr.bf16.mxu0 0
    %460 = vmatpush1.bf16.msra.mxu0 %v436
    %461 = vmatprep.subr.bf16.mxu0 0
    %462 = vmatpush1.bf16.msra.mxu0 0
    %463 = vmatprep.subr.bf16.mxu0 0
    %464 = vmatpush1.bf16.msra.mxu0 0
    %465 = vmatprep.subr.bf16.mxu0 0
    %466 = vmatpush1.bf16.msra.mxu0 0
    %467 = vmatprep.subr.bf16.mxu0 0
    %468 = vmatpush1.bf16.msra.mxu0 0
    %469 = vmatprep.subr.bf16.mxu0 0
    %470 = vmatpush1.bf16.msra.mxu0 0
    %471 = vmatprep.subr.bf16.mxu0 0
    %472 = vmatpush1.bf16.msra.mxu0 0
    %473 = vmatprep.subr.bf16.mxu0 0
    %474 = vmatpush1.bf16.msra.mxu0 0
    %475 = vmatprep.subr.bf16.mxu0 0
    %476 = vmatpush1.bf16.msra.mxu0 0
    %477 = vmatprep.mubr.bf16.mxu0 0
    %478 = vmatmul.mubr.bf16.gmra.mrb[0].mxu0 %v373
    %v479 = vpop.f32.mrb[0].mxu0
    %v480 = vadd.f32 %v395, %v479
    %v481 = vpop.f32.mrb[0].mxu0
    %v482 = vpop.f32.mrb[0].mxu0
    %v483 = vpop.f32.mrb[0].mxu0
    %484 = vdwg.mxu0
    %vm485 = vcmp.gt.f32.partialorder %v480, 0.0
    %v486 = vmul.f32 %v480, 0.01
    %v487 = vsel %vm485, %v480, %v486
    %v488 = vld [vmem:[%s9] sm:$0x1]
    %v490 = vlaneseq
    %v491 = vshrl.u32 %v490, 7
    %v492 = vsub.s32 0, %v491
    %v493 = vrot.slane %v488, %v492
    %v495 = vmul.f32 %v487, %v493
    %vm496 = vcmask 523264
    %v497 = vsel %vm496, %v495, 0.0
    %498 = vadd.xlane.f32.xlu0 %v497
    %v499 = vpop.xlane.xlu0 %498
    %s500 = sld [smem:[#allocation2]]
    %v501 = vstv %s500
    %v502 = vadd.f32 %v499, %v501
    %vm503 = vcmask 7168
    %504 = vst.msk [vmem:[%s11] sm:$0xff] %vm503, %v502
    // Predicated region
    $region50: #{tpu_custom_call.1} parent=1 // pred_check
      _
    $region51: #{tpu_custom_call.1} parent=1 // pred_check_branch
      %506 = sbr.rel (0) target = $region53
    $region52: #{tpu_custom_call.1} parent=1 // pred_region
      _
    $region53: #{tpu_custom_call.1} parent=1 // pred_fallthru
      _
    // Predicated region
    $region54: #{tpu_custom_call.1} parent=1 // pred_check
      _
    $region55: #{tpu_custom_call.1} parent=1 // pred_check_branch
      %508 = sbr.rel (0) target = $region57
    $region56: #{tpu_custom_call.1} parent=1 // pred_region
      _
    $region57: #{tpu_custom_call.1} parent=1 // pred_fallthru
      _
    %509 = vsyncpa [#allocation4], 1

</llo_original>
